<compile_context>
chip_gen: v5e
topology: v5e:2x2
jax: 0.10.0
libtpu: 0.0.40
codegen_flags: <defaults>
</compile_context>

<pallas_src>
import functools

import jax
import jax.numpy as jnp
import numpy as np
from jax import lax
from jax.experimental import pallas as pl
from jax.experimental.pallas import tpu as pltpu

# ---- small problem sizes consistent with the module --------------------------
BATCH = 2
IMG_C = 1          # img_size = (1, 16, 16)
AUG = 3            # augment_dim
CH = IMG_C + AUG   # channels seen by the ODE func (x is already augmented)
H = W = 16
NF = 8             # num_filters


def _round_up(v, m):
  return (v + m - 1) // m * m


def _geometry(n, h, w):
  """Padded geometry: 1-pixel zero border; wp = power of two >= w+2."""
  hp = h + 2
  wp = max(8, 1 << (w + 1).bit_length())      # power of two >= w + 2
  s_pad = _round_up(n * hp * wp, 128)         # lane width of all tiles
  return hp, wp, s_pad


def _conv_odefunc_kernel(x_ref, w1_ref, b1_ref, w2_ref, b2_ref, w3_ref, b3_ref,
                         o_ref, *, n, h, w, hp, wp, s_pad, tap_offs):
  """conv1(1x1)+ReLU -> conv2(3x3, pad 1)+ReLU -> conv3(1x1), (C,S) layout."""
  wp_log2 = wp.bit_length() - 1

  # Validity mask of interior pixels, built from a lane iota (no mask DMA, no
  # integer division: wp is a power of two, row % hp via n-1 selects).
  pos = lax.broadcasted_iota(jnp.int32, (1, s_pad), 1)
  col = pos & (wp - 1)
  img_row = pos >> wp_log2
  for _ in range(n - 1):                      # row % hp without a vector div
    img_row = jnp.where(img_row >= hp, img_row - hp, img_row)
  valid = (img_row >= 1) & (img_row <= h) & (col >= 1) & (col <= w)

  # conv1 (1x1) + bias + ReLU.  The mask restores exact zeros at padding
  # positions (bias + ReLU would otherwise leak relu(b1) into them), so conv2
  # sees true zero padding.
  h1 = jnp.dot(w1_ref[...], x_ref[...], preferred_element_type=jnp.float32)
  h1 = jnp.where(valid, jnp.maximum(h1 + b1_ref[...], 0.0), 0.0)    # (NF,S) f32

  # conv2 (3x3, padding=1): 9 lane-rolled copies of h1 (XLU) stacked along the
  # contraction axis, then a single (NF, 9*NF) @ (9*NF, S) MXU matmul.
  # Roll wrap-around only affects padded output positions that are discarded.
  taps = []
  for off in tap_offs:
    shift = (-off) % s_pad                    # rolled[p] = h1[p + off]
    taps.append(h1 if shift == 0 else pltpu.roll(h1, shift, 1))
  stacked = jnp.concatenate(taps, axis=0).astype(jnp.bfloat16)      # (9*NF, S)
  h2 = jnp.dot(w2_ref[...], stacked, preferred_element_type=jnp.float32)
  h2 = jnp.maximum(h2 + b2_ref[...], 0.0).astype(jnp.bfloat16)      # (NF, S)

  # conv3 (1x1) + bias, no trailing nonlinearity (matches the module).
  out = jnp.dot(w3_ref[...], h2, preferred_element_type=jnp.float32)
  o_ref[...] = (out + b3_ref[...]).astype(o_ref.dtype)


def pack_params(w1_oihw, b1, w2_oihw, b2, w3_oihw, b3):
  """One-time conversion of Conv2d parameters into kernel-friendly matrices."""
  nf, c = w1_oihw.shape[0], w1_oihw.shape[1]
  w1 = w1_oihw[:, :, 0, 0].astype(jnp.bfloat16)                      # (NF, C)
  # Tap order = (ky outer, kx inner), matching tap_offs in the kernel.
  w2 = jnp.concatenate([w2_oihw[:, :, ky, kx] for ky in range(3)
                        for kx in range(3)], axis=1).astype(jnp.bfloat16)  # (NF, 9*NF)
  w3 = w3_oihw[:, :, 0, 0].astype(jnp.bfloat16)                      # (C, NF)
  return (w1, b1.reshape(nf, 1).astype(jnp.float32),
          w2, b2.reshape(nf, 1).astype(jnp.float32),
          w3, b3.reshape(c, 1).astype(jnp.float32))


def conv_ode_func_rhs_flat(x_flat, packed, *, n, c, h, w):
  """ODE RHS in the kernel's native (C, S_pad) bf16 layout (hot-path form)."""
  w1, b1, w2, b2, w3, b3 = packed
  nf = w1.shape[0]
  hp, wp, s_pad = _geometry(n, h, w)
  assert x_flat.shape == (c, s_pad), x_flat.shape
  tap_offs = tuple(dy * wp + dx for dy in (-1, 0, 1) for dx in (-1, 0, 1))

  kernel = functools.partial(_conv_odefunc_kernel, n=n, h=h, w=w, hp=hp,
                             wp=wp, s_pad=s_pad, tap_offs=tap_offs)

  flops = 2 * s_pad * (nf * c + nf * 9 * nf + c * nf)
  bytes_accessed = int(
      x_flat.size * x_flat.dtype.itemsize
      + sum(p.size * p.dtype.itemsize for p in packed)
      + s_pad * c * 4)

  return pl.pallas_call(
      kernel,
      out_shape=jax.ShapeDtypeStruct((c, s_pad), jnp.float32),
      in_specs=[pl.BlockSpec(memory_space=pltpu.MemorySpace.VMEM)] * 7,
      out_specs=pl.BlockSpec(memory_space=pltpu.MemorySpace.VMEM),
      cost_estimate=pl.CostEstimate(flops=flops, transcendentals=0,
                                    bytes_accessed=bytes_accessed),
  )(x_flat, w1, b1, w2, b2, w3, b3)


def nchw_to_flat(x_nchw, *, hp, wp, s_pad):
  """NCHW f32 -> (C, S_pad) bf16 padded, channels-on-sublanes layout."""
  n, c, h, w = x_nchw.shape
  xp = jnp.zeros((c, n, hp, wp), jnp.bfloat16)
  xp = xp.at[:, :, 1:h + 1, 1:w + 1].set(
      jnp.transpose(x_nchw, (1, 0, 2, 3)).astype(jnp.bfloat16))
  x_flat = xp.reshape(c, n * hp * wp)
  if s_pad > n * hp * wp:
    x_flat = jnp.pad(x_flat, ((0, 0), (0, s_pad - n * hp * wp)))
  return x_flat


def flat_to_nchw(out_flat, *, n, c, h, w, hp, wp):
  out = out_flat[:, :n * hp * wp].reshape(c, n, hp, wp)[:, :, 1:h + 1, 1:w + 1]
  return jnp.transpose(out, (1, 0, 2, 3))


def conv_ode_func_forward(t, x_nchw, packed):
  """Pallas forward of ConvODEFunc.forward(t, x); t is unused by the module."""
  del t
  n, c, h, w = x_nchw.shape
  hp, wp, s_pad = _geometry(n, h, w)
  x_flat = nchw_to_flat(x_nchw, hp=hp, wp=wp, s_pad=s_pad)
  out_flat = conv_ode_func_rhs_flat(x_flat, packed, n=n, c=c, h=h, w=w)
  out = flat_to_nchw(out_flat, n=n, c=c, h=h, w=w, hp=hp, wp=wp)
  return out.astype(x_nchw.dtype)


# ---------------- plain-JAX reference (XLA convs) for sanity check ------------
def _conv_odefunc_ref(x, w1_oihw, b1, w2_oihw, b2, w3_oihw, b3):
  dn = ('NCHW', 'OIHW', 'NCHW')
  out = lax.conv_general_dilated(x, w1_oihw, (1, 1), 'VALID',
                                 dimension_numbers=dn)
  out = jax.nn.relu(out + b1[None, :, None, None])
  out = lax.conv_general_dilated(out, w2_oihw, (1, 1), ((1, 1), (1, 1)),
                                 dimension_numbers=dn)
  out = jax.nn.relu(out + b2[None, :, None, None])
  out = lax.conv_general_dilated(out, w3_oihw, (1, 1), 'VALID',
                                 dimension_numbers=dn)
  return out + b3[None, :, None, None]


if __name__ == "__main__":
  key = jax.random.PRNGKey(0)
  kx, k1, k2, k3, k4, k5, k6 = jax.random.split(key, 7)

  # x is the already-augmented input that ConvODEFunc.forward receives.
  x = jax.random.normal(kx, (BATCH, CH, H, W), dtype=jnp.float32)

  w1_oihw = jax.random.normal(k1, (NF, CH, 1, 1), jnp.float32) / np.sqrt(CH)
  b1 = 0.05 * jax.random.normal(k2, (NF,), jnp.float32)
  w2_oihw = jax.random.normal(k3, (NF, NF, 3, 3), jnp.float32) / np.sqrt(9 * NF)
  b2 = 0.05 * jax.random.normal(k4, (NF,), jnp.float32)
  w3_oihw = jax.random.normal(k5, (CH, NF, 1, 1), jnp.float32) / np.sqrt(NF)
  b3 = 0.05 * jax.random.normal(k6, (CH,), jnp.float32)

  packed = pack_params(w1_oihw, b1, w2_oihw, b2, w3_oihw, b3)

  t = jnp.zeros(())  # ignored by the module's forward
  out = jax.block_until_ready(conv_ode_func_forward(t, x, packed))
  assert out.shape == (BATCH, CH, H, W), out.shape
  assert bool(jnp.all(jnp.isfinite(out)))

  ref = jax.block_until_ready(
      _conv_odefunc_ref(x, w1_oihw, b1, w2_oihw, b2, w3_oihw, b3))
  max_err = float(jnp.max(jnp.abs(out - ref)))
  # bf16 MXU operands with f32 accumulation -> small difference vs f32 XLA conv.
  assert max_err < 1e-1, f"max abs err vs lax.conv reference too large: {max_err}"

  print("KERNEL_OK")
</pallas_src>

<mosaic_0001>
module attributes {stable_mosaic.version = 11 : i64} {
  func.func @_conv_odefunc_kernel(%arg0: memref<4x1152xbf16, #tpu.memory_space<vmem>>, %arg1: memref<8x4xbf16, #tpu.memory_space<vmem>>, %arg2: memref<8x1xf32, #tpu.memory_space<vmem>>, %arg3: memref<8x72xbf16, #tpu.memory_space<vmem>>, %arg4: memref<8x1xf32, #tpu.memory_space<vmem>>, %arg5: memref<4x8xbf16, #tpu.memory_space<vmem>>, %arg6: memref<4x1xf32, #tpu.memory_space<vmem>>, %arg7: memref<4x1152xf32, #tpu.memory_space<vmem>>) attributes {dimension_semantics = [], scalar_prefetch = 0 : i64, scratch_operands = 0 : i64, tpu.core_type = #tpu.core_type<tc>} {
    %0 = tpu.iota {dimensions = array<i32: 1>} : vector<1x1152xi32>
    %c31_i32 = arith.constant 31 : i32
    %1 = vector.broadcast %c31_i32 : i32 to vector<1x1152xi32>
    %2 = arith.andi %0, %1 : vector<1x1152xi32>
    %c5_i32 = arith.constant 5 : i32
    %3 = vector.broadcast %c5_i32 : i32 to vector<1x1152xi32>
    %4 = arith.shrsi %0, %3 : vector<1x1152xi32>
    %c18_i32 = arith.constant 18 : i32
    %5 = vector.broadcast %c18_i32 : i32 to vector<1x1152xi32>
    %6 = arith.cmpi sge, %4, %5 : vector<1x1152xi32>
    %c18_i32_0 = arith.constant 18 : i32
    %7 = vector.broadcast %c18_i32_0 : i32 to vector<1x1152xi32>
    %8 = arith.subi %4, %7 : vector<1x1152xi32>
    %9 = arith.select %6, %8, %4 : vector<1x1152xi1>, vector<1x1152xi32>
    %c1_i32 = arith.constant 1 : i32
    %10 = vector.broadcast %c1_i32 : i32 to vector<1x1152xi32>
    %11 = arith.cmpi sge, %9, %10 : vector<1x1152xi32>
    %c16_i32 = arith.constant 16 : i32
    %12 = vector.broadcast %c16_i32 : i32 to vector<1x1152xi32>
    %13 = arith.cmpi sle, %9, %12 : vector<1x1152xi32>
    %14 = arith.andi %11, %13 : vector<1x1152xi1>
    %c1_i32_1 = arith.constant 1 : i32
    %15 = vector.broadcast %c1_i32_1 : i32 to vector<1x1152xi32>
    %16 = arith.cmpi sge, %2, %15 : vector<1x1152xi32>
    %17 = arith.andi %14, %16 : vector<1x1152xi1>
    %c16_i32_2 = arith.constant 16 : i32
    %18 = vector.broadcast %c16_i32_2 : i32 to vector<1x1152xi32>
    %19 = arith.cmpi sle, %2, %18 : vector<1x1152xi32>
    %20 = arith.andi %17, %19 : vector<1x1152xi1>
    %c0 = arith.constant 0 : index
    %c0_3 = arith.constant 0 : index
    %21 = vector.load %arg1[%c0, %c0_3] : memref<8x4xbf16, #tpu.memory_space<vmem>>, vector<8x4xbf16>
    %c0_4 = arith.constant 0 : index
    %c0_5 = arith.constant 0 : index
    %22 = vector.load %arg0[%c0_4, %c0_5] : memref<4x1152xbf16, #tpu.memory_space<vmem>>, vector<4x1152xbf16>
    %cst = arith.constant dense<0.000000e+00> : vector<8x1152xf32>
    %23 = tpu.matmul %21, %22, %cst {dimension_numbers = #tpu.dot_dimension_numbers<[1], [0], [0], [1], [0, 0, 1, 1], [], []>} : vector<8x4xbf16>, vector<4x1152xbf16>, vector<8x1152xf32> -> vector<8x1152xf32>
    %c0_6 = arith.constant 0 : index
    %c0_7 = arith.constant 0 : index
    %24 = vector.load %arg2[%c0_6, %c0_7] : memref<8x1xf32, #tpu.memory_space<vmem>>, vector<8x1xf32>
    %25 = vector.broadcast %24 : vector<8x1xf32> to vector<8x1152xf32>
    %26 = arith.addf %23, %25 : vector<8x1152xf32>
    %cst_8 = arith.constant 0.000000e+00 : f32
    %27 = vector.broadcast %cst_8 : f32 to vector<8x1152xf32>
    %28 = arith.maximumf %26, %27 : vector<8x1152xf32>
    %cst_9 = arith.constant 0.000000e+00 : f32
    %29 = vector.shape_cast %20 : vector<1x1152xi1> to vector<1x1152xi1>
    %30 = vector.broadcast %29 : vector<1x1152xi1> to vector<8x1152xi1>
    %31 = vector.broadcast %cst_9 : f32 to vector<8x1152xf32>
    %32 = arith.select %30, %28, %31 : vector<8x1152xi1>, vector<8x1152xf32>
    %c33_i32 = arith.constant 33 : i32
    %33 = tpu.dynamic_rotate %32 by %c33_i32 dim 1 : vector<8x1152xf32>, i32 -> vector<8x1152xf32>
    %c32_i32 = arith.constant 32 : i32
    %34 = tpu.dynamic_rotate %32 by %c32_i32 dim 1 : vector<8x1152xf32>, i32 -> vector<8x1152xf32>
    %c31_i32_10 = arith.constant 31 : i32
    %35 = tpu.dynamic_rotate %32 by %c31_i32_10 dim 1 : vector<8x1152xf32>, i32 -> vector<8x1152xf32>
    %c1_i32_11 = arith.constant 1 : i32
    %36 = tpu.dynamic_rotate %32 by %c1_i32_11 dim 1 : vector<8x1152xf32>, i32 -> vector<8x1152xf32>
    %c1151_i32 = arith.constant 1151 : i32
    %37 = tpu.dynamic_rotate %32 by %c1151_i32 dim 1 : vector<8x1152xf32>, i32 -> vector<8x1152xf32>
    %c1121_i32 = arith.constant 1121 : i32
    %38 = tpu.dynamic_rotate %32 by %c1121_i32 dim 1 : vector<8x1152xf32>, i32 -> vector<8x1152xf32>
    %c1120_i32 = arith.constant 1120 : i32
    %39 = tpu.dynamic_rotate %32 by %c1120_i32 dim 1 : vector<8x1152xf32>, i32 -> vector<8x1152xf32>
    %c1119_i32 = arith.constant 1119 : i32
    %40 = tpu.dynamic_rotate %32 by %c1119_i32 dim 1 : vector<8x1152xf32>, i32 -> vector<8x1152xf32>
    %41 = tpu.concatenate %33, %34, %35, %36, %32, %37, %38, %39, %40 in 0 : vector<8x1152xf32>, vector<8x1152xf32>, vector<8x1152xf32>, vector<8x1152xf32>, vector<8x1152xf32>, vector<8x1152xf32>, vector<8x1152xf32>, vector<8x1152xf32>, vector<8x1152xf32> -> vector<72x1152xf32>
    %42 = arith.truncf %41 : vector<72x1152xf32> to vector<72x1152xbf16>
    %c0_12 = arith.constant 0 : index
    %c0_13 = arith.constant 0 : index
    %43 = vector.load %arg3[%c0_12, %c0_13] : memref<8x72xbf16, #tpu.memory_space<vmem>>, vector<8x72xbf16>
    %cst_14 = arith.constant dense<0.000000e+00> : vector<8x1152xf32>
    %44 = tpu.matmul %43, %42, %cst_14 {dimension_numbers = #tpu.dot_dimension_numbers<[1], [0], [0], [1], [0, 0, 1, 1], [], []>} : vector<8x72xbf16>, vector<72x1152xbf16>, vector<8x1152xf32> -> vector<8x1152xf32>
    %c0_15 = arith.constant 0 : index
    %c0_16 = arith.constant 0 : index
    %45 = vector.load %arg4[%c0_15, %c0_16] : memref<8x1xf32, #tpu.memory_space<vmem>>, vector<8x1xf32>
    %46 = vector.broadcast %45 : vector<8x1xf32> to vector<8x1152xf32>
    %47 = arith.addf %44, %46 : vector<8x1152xf32>
    %cst_17 = arith.constant 0.000000e+00 : f32
    %48 = vector.broadcast %cst_17 : f32 to vector<8x1152xf32>
    %49 = arith.maximumf %47, %48 : vector<8x1152xf32>
    %50 = arith.truncf %49 : vector<8x1152xf32> to vector<8x1152xbf16>
    %c0_18 = arith.constant 0 : index
    %c0_19 = arith.constant 0 : index
    %51 = vector.load %arg5[%c0_18, %c0_19] : memref<4x8xbf16, #tpu.memory_space<vmem>>, vector<4x8xbf16>
    %cst_20 = arith.constant dense<0.000000e+00> : vector<4x1152xf32>
    %52 = tpu.matmul %51, %50, %cst_20 {dimension_numbers = #tpu.dot_dimension_numbers<[1], [0], [0], [1], [0, 0, 1, 1], [], []>} : vector<4x8xbf16>, vector<8x1152xbf16>, vector<4x1152xf32> -> vector<4x1152xf32>
    %c0_21 = arith.constant 0 : index
    %c0_22 = arith.constant 0 : index
    %53 = vector.load %arg6[%c0_21, %c0_22] : memref<4x1xf32, #tpu.memory_space<vmem>>, vector<4x1xf32>
    %54 = vector.broadcast %53 : vector<4x1xf32> to vector<4x1152xf32>
    %55 = arith.addf %52, %54 : vector<4x1152xf32>
    %c0_23 = arith.constant 0 : index
    %c0_24 = arith.constant 0 : index
    %56 = vector.load %arg7[%c0_23, %c0_24] : memref<4x1152xf32, #tpu.memory_space<vmem>>, vector<4x1152xf32>
    tpu.vector_store %arg7[%c0_23, %c0_24], %55 {strides = array<i32>} : memref<4x1152xf32, #tpu.memory_space<vmem>>, vector<4x1152xf32>,
    return
  }
}

</mosaic_0001>

<llo_original>
// kernel: tpu_custom_call.1
$region0: #{tpu_custom_call.1}
  #allocation0 [shape = 'u32[]', space=smem, size = 0x4, offset = 0x4, fixed_abs, tag = 'smem constant byte address 0x4 - core index']
  #allocation1 [shape = 'u32[72,128]{1,0:T(1,128)}', space=vmem, size = 0x9000, scoped, tag = 'internal scratch']
  %s0 = inlined_call_operand.vmem [shape: bf16[4,1152], index: 0, kind: input, shape index: {}]
  %s1 = inlined_call_operand.vmem [shape: bf16[8,4], index: 1, kind: input, shape index: {}]
  %s2 = inlined_call_operand.vmem [shape: f32[8,1], index: 2, kind: input, shape index: {}]
  %s3 = inlined_call_operand.vmem [shape: bf16[8,72], index: 3, kind: input, shape index: {}]
  %s4 = inlined_call_operand.vmem [shape: f32[8,1], index: 4, kind: input, shape index: {}]
  %s5 = inlined_call_operand.vmem [shape: bf16[4,8], index: 5, kind: input, shape index: {}]
  %s6 = inlined_call_operand.vmem [shape: f32[4,1], index: 6, kind: input, shape index: {}]
  %s7 = inlined_call_operand.hbm [shape: f32[4,1152], index: 7, kind: output, shape index: {}]
  %s8 = sld [smem:[#allocation0]]
  $region38: #{tpu_custom_call.1} parent=0
    _
  %s10 = ssub.s32 1, %s8
  %s11 = scalar_select 0, %s10, %s8
  $region1: #{tpu_custom_call.1} parent=0
    #allocation2 [shape = 'u8[18432]{0}', space=vmem, size = 0x4800, scoped, tag = 'output window, operand 0, single buffered']
    #allocation3 [shape = 's32[1]{0}', space=sflag, size = 0x4, scoped, tag = 'scoped memory for tpu_custom_call.1']
    %12 = vsyncpa [#allocation3], 0
    // Predicated region
    $region2: #{tpu_custom_call.1} parent=1 // pred_check
      _
    $region3: #{tpu_custom_call.1} parent=1 // pred_check_branch
      %14 = sbr.rel (0) target = $region5
    $region4: #{tpu_custom_call.1} parent=1 // pred_region
      _
    $region5: #{tpu_custom_call.1} parent=1 // pred_fallthru
      _
    // Predicated region
    $region6: #{tpu_custom_call.1} parent=1 // pred_check
      _
    $region7: #{tpu_custom_call.1} parent=1 // pred_check_branch
      %16 = sbr.rel (0) target = $region9
    $region8: #{tpu_custom_call.1} parent=1 // pred_region
      _
    $region9: #{tpu_custom_call.1} parent=1 // pred_fallthru
      _
    // Predicated region
    $region10: #{tpu_custom_call.1} parent=1 // pred_check
      _
    $region11: #{tpu_custom_call.1} parent=1 // pred_check_branch
      %18 = sbr.rel (0) target = $region13
    $region12: #{tpu_custom_call.1} parent=1 // pred_region
      _
    $region13: #{tpu_custom_call.1} parent=1 // pred_fallthru
      _
    // Predicated region
    $region14: #{tpu_custom_call.1} parent=1 // pred_check
      _
    $region15: #{tpu_custom_call.1} parent=1 // pred_check_branch
      %20 = sbr.rel (0) target = $region17
    $region16: #{tpu_custom_call.1} parent=1 // pred_region
      _
    $region17: #{tpu_custom_call.1} parent=1 // pred_fallthru
      _
    // Predicated region
    $region18: #{tpu_custom_call.1} parent=1 // pred_check
      _
    $region19: #{tpu_custom_call.1} parent=1 // pred_check_branch
      %22 = sbr.rel (0) target = $region21
    $region20: #{tpu_custom_call.1} parent=1 // pred_region
      _
    $region21: #{tpu_custom_call.1} parent=1 // pred_fallthru
      _
    // Predicated region
    $region22: #{tpu_custom_call.1} parent=1 // pred_check
      _
    $region23: #{tpu_custom_call.1} parent=1 // pred_check_branch
      %24 = sbr.rel (0) target = $region25
    $region24: #{tpu_custom_call.1} parent=1 // pred_region
      _
    $region25: #{tpu_custom_call.1} parent=1 // pred_fallthru
      _
    // Predicated region
    $region26: #{tpu_custom_call.1} parent=1 // pred_check
      _
    $region27: #{tpu_custom_call.1} parent=1 // pred_check_branch
      %26 = sbr.rel (0) target = $region29
    $region28: #{tpu_custom_call.1} parent=1 // pred_region
      _
    $region29: #{tpu_custom_call.1} parent=1 // pred_fallthru
      _
    %v28 = vlaneseq
    %v29 = vand.u32 %v28, 127
    %v30 = vadd.s32 %v29, 128
    %v31 = vadd.s32 %v29, 256
    %v32 = vadd.s32 %v29, 384
    %v33 = vadd.s32 %v29, 512
    %v34 = vadd.s32 %v29, 640
    %v35 = vadd.s32 %v29, 768
    %v36 = vadd.s32 %v29, 896
    %v37 = vadd.s32 %v29, 1024
    %v38 = vand.u32 %v29, 31
    %v39 = vand.u32 %v30, 31
    %v40 = vand.u32 %v31, 31
    %v41 = vand.u32 %v32, 31
    %v42 = vand.u32 %v33, 31
    %v43 = vand.u32 %v34, 31
    %v44 = vand.u32 %v35, 31
    %v45 = vand.u32 %v36, 31
    %v46 = vand.u32 %v37, 31
    %v47 = vshra.s32 %v29, 5
    %v48 = vshra.s32 %v30, 5
    %v49 = vshra.s32 %v31, 5
    %v50 = vshra.s32 %v32, 5
    %v51 = vshra.s32 %v33, 5
    %v52 = vshra.s32 %v34, 5
    %v53 = vshra.s32 %v35, 5
    %v54 = vshra.s32 %v36, 5
    %v55 = vshra.s32 %v37, 5
    %vm56 = vcmp.ge.s32.totalorder %v47, 18
    %vm57 = vcmp.ge.s32.totalorder %v48, 18
    %vm58 = vcmp.ge.s32.totalorder %v49, 18
    %vm59 = vcmp.ge.s32.totalorder %v50, 18
    %vm60 = vcmp.ge.s32.totalorder %v51, 18
    %vm61 = vcmp.ge.s32.totalorder %v52, 18
    %vm62 = vcmp.ge.s32.totalorder %v53, 18
    %vm63 = vcmp.ge.s32.totalorder %v54, 18
    %vm64 = vcmp.ge.s32.totalorder %v55, 18
    %v65 = vsub.s32 %v47, 18
    %v66 = vsub.s32 %v48, 18
    %v67 = vsub.s32 %v49, 18
    %v68 = vsub.s32 %v50, 18
    %v69 = vsub.s32 %v51, 18
    %v70 = vsub.s32 %v52, 18
    %v71 = vsub.s32 %v53, 18
    %v72 = vsub.s32 %v54, 18
    %v73 = vsub.s32 %v55, 18
    %v74 = vsel %vm56, %v65, %v47
    %v75 = vsel %vm57, %v66, %v48
    %v76 = vsel %vm58, %v67, %v49
    %v77 = vsel %vm59, %v68, %v50
    %v78 = vsel %vm60, %v69, %v51
    %v79 = vsel %vm61, %v70, %v52
    %v80 = vsel %vm62, %v71, %v53
    %v81 = vsel %vm63, %v72, %v54
    %v82 = vsel %vm64, %v73, %v55
    %vm83 = vcmp.ge.s32.totalorder %v74, 1
    %vm84 = vcmp.ge.s32.totalorder %v75, 1
    %vm85 = vcmp.ge.s32.totalorder %v76, 1
    %vm86 = vcmp.ge.s32.totalorder %v77, 1
    %vm87 = vcmp.ge.s32.totalorder %v78, 1
    %vm88 = vcmp.ge.s32.totalorder %v79, 1
    %vm89 = vcmp.ge.s32.totalorder %v80, 1
    %vm90 = vcmp.ge.s32.totalorder %v81, 1
    %vm91 = vcmp.ge.s32.totalorder %v82, 1
    %vm92 = vcmp.le.s32.totalorder %v74, 16
    %vm93 = vcmp.le.s32.totalorder %v75, 16
    %vm94 = vcmp.le.s32.totalorder %v76, 16
    %vm95 = vcmp.le.s32.totalorder %v77, 16
    %vm96 = vcmp.le.s32.totalorder %v78, 16
    %vm97 = vcmp.le.s32.totalorder %v79, 16
    %vm98 = vcmp.le.s32.totalorder %v80, 16
    %vm99 = vcmp.le.s32.totalorder %v81, 16
    %vm100 = vcmp.le.s32.totalorder %v82, 16
    %vm101 = vmand %vm83, %vm92
    %vm102 = vmand %vm84, %vm93
    %vm103 = vmand %vm85, %vm94
    %vm104 = vmand %vm86, %vm95
    %vm105 = vmand %vm87, %vm96
    %vm106 = vmand %vm88, %vm97
    %vm107 = vmand %vm89, %vm98
    %vm108 = vmand %vm90, %vm99
    %vm109 = vmand %vm91, %vm100
    %vm110 = vcmp.ge.s32.totalorder %v38, 1
    %vm111 = vcmp.ge.s32.totalorder %v39, 1
    %vm112 = vcmp.ge.s32.totalorder %v40, 1
    %vm113 = vcmp.ge.s32.totalorder %v41, 1
    %vm114 = vcmp.ge.s32.totalorder %v42, 1
    %vm115 = vcmp.ge.s32.totalorder %v43, 1
    %vm116 = vcmp.ge.s32.totalorder %v44, 1
    %vm117 = vcmp.ge.s32.totalorder %v45, 1
    %vm118 = vcmp.ge.s32.totalorder %v46, 1
    %vm119 = vmand %vm101, %vm110
    %vm120 = vmand %vm102, %vm111
    %vm121 = vmand %vm103, %vm112
    %vm122 = vmand %vm104, %vm113
    %vm123 = vmand %vm105, %vm114
    %vm124 = vmand %vm106, %vm115
    %vm125 = vmand %vm107, %vm116
    %vm126 = vmand %vm108, %vm117
    %vm127 = vmand %vm109, %vm118
    %vm128 = vcmp.le.s32.totalorder %v38, 16
    %vm129 = vcmp.le.s32.totalorder %v39, 16
    %vm130 = vcmp.le.s32.totalorder %v40, 16
    %vm131 = vcmp.le.s32.totalorder %v41, 16
    %vm132 = vcmp.le.s32.totalorder %v42, 16
    %vm133 = vcmp.le.s32.totalorder %v43, 16
    %vm134 = vcmp.le.s32.totalorder %v44, 16
    %vm135 = vcmp.le.s32.totalorder %v45, 16
    %vm136 = vcmp.le.s32.totalorder %v46, 16
    %vm137 = vmand %vm119, %vm128
    %vm138 = vmand %vm120, %vm129
    %vm139 = vmand %vm121, %vm130
    %vm140 = vmand %vm122, %vm131
    %vm141 = vmand %vm123, %vm132
    %vm142 = vmand %vm124, %vm133
    %vm143 = vmand %vm125, %vm134
    %vm144 = vmand %vm126, %vm135
    %vm145 = vmand %vm127, %vm136
    %v146 = vld [vmem:[%s1] sm:$0xf]
    %v147 = vld [vmem:[%s0] sm:$0xff]
    %v148 = vld [vmem:[%s0 + $0x8] sm:$0xff]
    %v149 = vld [vmem:[%s0 + $0x10] sm:$0x3]
    %v150 = vld [vmem:[%s2] sm:$0xff]
    %152 = vset.pattern.permute.xlu0 0
    %153 = vperm.xlu0 %152, %v150
    %v154 = vpop.permute.xlu0 %153
    %157 = vst [vmem:[#allocation1] ss:$4 sm:$0xff] %v147
    %s159 = scalar_lea.vmem [#allocation1], 32
    %160 = vst [vmem:[%s159] ss:$4 sm:$0xff] %v148
    %v161 = vld.sshfl [vmem:[#allocation1] sm:$0xff pattern:$0x73625140]
    %v162 = vld.sshfl [vmem:[#allocation1 + $0x8] sm:$0xff pattern:$0x73625140]
    %v163 = vld.sshfl [vmem:[#allocation1 + $0x10] sm:$0xff pattern:$0x73625140]
    %v164 = vld.sshfl [vmem:[#allocation1 + $0x18] sm:$0xff pattern:$0x73625140]
    %v165 = vld.sshfl [vmem:[#allocation1 + $0x20] sm:$0xff pattern:$0x73625140]
    %v166 = vld.sshfl [vmem:[#allocation1 + $0x28] sm:$0xff pattern:$0x73625140]
    %v167 = vld.sshfl [vmem:[#allocation1 + $0x30] sm:$0xff pattern:$0x73625140]
    %v168 = vld.sshfl [vmem:[#allocation1 + $0x38] sm:$0xff pattern:$0x73625140]
    %170 = vst [vmem:[#allocation1] ss:$4 sm:$0xff] %v149
    %v171 = vld.sshfl [vmem:[#allocation1] sm:$0xff pattern:$0x73625140]
    %vm172 = vcmask 31744
    %v174 = vsel %vm172, %v146, 0
    %vm176 = vcmask 1041408
    %v177 = vsel %vm176, %v161, 0
    %v179 = vsel %vm176, %v162, 0
    %v181 = vsel %vm176, %v163, 0
    %v183 = vsel %vm176, %v164, 0
    %v185 = vsel %vm176, %v165, 0
    %v187 = vsel %vm176, %v166, 0
    %v189 = vsel %vm176, %v167, 0
    %v191 = vsel %vm176, %v168, 0
    %v193 = vsel %vm176, %v171, 0
    %195 = vmatpush.bf16.msra.mxu0 0
    %196 = vmatpush.bf16.msra.mxu0 0
    %197 = vmatpush.bf16.msra.mxu0 0
    %198 = vmatpush.bf16.msra.mxu0 0
    %199 = vmatpush.bf16.msra.mxu0 0
    %200 = vmatpush.bf16.msra.mxu0 0
    %201 = vmatpush.bf16.msra.mxu0 0
    %202 = vmatpush.bf16.msra.mxu0 %v177
    %203 = vmatmul.bf16.gmra.mxu0 %v174
    %v204 = vpop.f32.mrf.mxu0
    %v205 = vadd.f32 %v154, %v204
    %v206 = vpop.f32.mrf.mxu0
    %207 = vdwg.mxu0
    %208 = vmatpush.bf16.msra.mxu0 0
    %209 = vmatpush.bf16.msra.mxu0 0
    %210 = vmatpush.bf16.msra.mxu0 0
    %211 = vmatpush.bf16.msra.mxu0 0
    %212 = vmatpush.bf16.msra.mxu0 0
    %213 = vmatpush.bf16.msra.mxu0 0
    %214 = vmatpush.bf16.msra.mxu0 0
    %215 = vmatpush.bf16.msra.mxu0 %v179
    %216 = vmatmul.bf16.gmra.mxu0 %v174
    %v217 = vpop.f32.mrf.mxu0
    %v218 = vadd.f32 %v154, %v217
    %v219 = vpop.f32.mrf.mxu0
    %220 = vdwg.mxu0
    %221 = vmatpush.bf16.msra.mxu0 0
    %222 = vmatpush.bf16.msra.mxu0 0
    %223 = vmatpush.bf16.msra.mxu0 0
    %224 = vmatpush.bf16.msra.mxu0 0
    %225 = vmatpush.bf16.msra.mxu0 0
    %226 = vmatpush.bf16.msra.mxu0 0
    %227 = vmatpush.bf16.msra.mxu0 0
    %228 = vmatpush.bf16.msra.mxu0 %v181
    %229 = vmatmul.bf16.gmra.mxu0 %v174
    %v230 = vpop.f32.mrf.mxu0
    %v231 = vadd.f32 %v154, %v230
    %v232 = vpop.f32.mrf.mxu0
    %233 = vdwg.mxu0
    %234 = vmatpush.bf16.msra.mxu0 0
    %235 = vmatpush.bf16.msra.mxu0 0
    %236 = vmatpush.bf16.msra.mxu0 0
    %237 = vmatpush.bf16.msra.mxu0 0
    %238 = vmatpush.bf16.msra.mxu0 0
    %239 = vmatpush.bf16.msra.mxu0 0
    %240 = vmatpush.bf16.msra.mxu0 0
    %241 = vmatpush.bf16.msra.mxu0 %v183
    %242 = vmatmul.bf16.gmra.mxu0 %v174
    %v243 = vpop.f32.mrf.mxu0
    %v244 = vadd.f32 %v154, %v243
    %v245 = vpop.f32.mrf.mxu0
    %246 = vdwg.mxu0
    %247 = vmatpush.bf16.msra.mxu0 0
    %248 = vmatpush.bf16.msra.mxu0 0
    %249 = vmatpush.bf16.msra.mxu0 0
    %250 = vmatpush.bf16.msra.mxu0 0
    %251 = vmatpush.bf16.msra.mxu0 0
    %252 = vmatpush.bf16.msra.mxu0 0
    %253 = vmatpush.bf16.msra.mxu0 0
    %254 = vmatpush.bf16.msra.mxu0 %v185
    %255 = vmatmul.bf16.gmra.mxu0 %v174
    %v256 = vpop.f32.mrf.mxu0
    %v257 = vadd.f32 %v154, %v256
    %v258 = vpop.f32.mrf.mxu0
    %259 = vdwg.mxu0
    %260 = vmatpush.bf16.msra.mxu0 0
    %261 = vmatpush.bf16.msra.mxu0 0
    %262 = vmatpush.bf16.msra.mxu0 0
    %263 = vmatpush.bf16.msra.mxu0 0
    %264 = vmatpush.bf16.msra.mxu0 0
    %265 = vmatpush.bf16.msra.mxu0 0
    %266 = vmatpush.bf16.msra.mxu0 0
    %267 = vmatpush.bf16.msra.mxu0 %v187
    %268 = vmatmul.bf16.gmra.mxu0 %v174
    %v269 = vpop.f32.mrf.mxu0
    %v270 = vadd.f32 %v154, %v269
    %v271 = vpop.f32.mrf.mxu0
    %272 = vdwg.mxu0
    %273 = vmatpush.bf16.msra.mxu0 0
    %274 = vmatpush.bf16.msra.mxu0 0
    %275 = vmatpush.bf16.msra.mxu0 0
    %276 = vmatpush.bf16.msra.mxu0 0
    %277 = vmatpush.bf16.msra.mxu0 0
    %278 = vmatpush.bf16.msra.mxu0 0
    %279 = vmatpush.bf16.msra.mxu0 0
    %280 = vmatpush.bf16.msra.mxu0 %v189
    %281 = vmatmul.bf16.gmra.mxu0 %v174
    %v282 = vpop.f32.mrf.mxu0
    %v283 = vadd.f32 %v154, %v282
    %v284 = vpop.f32.mrf.mxu0
    %285 = vdwg.mxu0
    %286 = vmatpush.bf16.msra.mxu0 0
    %287 = vmatpush.bf16.msra.mxu0 0
    %288 = vmatpush.bf16.msra.mxu0 0
    %289 = vmatpush.bf16.msra.mxu0 0
    %290 = vmatpush.bf16.msra.mxu0 0
    %291 = vmatpush.bf16.msra.mxu0 0
    %292 = vmatpush.bf16.msra.mxu0 0
    %293 = vmatpush.bf16.msra.mxu0 %v191
    %294 = vmatmul.bf16.gmra.mxu0 %v174
    %v295 = vpop.f32.mrf.mxu0
    %v296 = vadd.f32 %v154, %v295
    %v297 = vpop.f32.mrf.mxu0
    %298 = vdwg.mxu0
    %299 = vmatpush.bf16.msra.mxu0 0
    %300 = vmatpush.bf16.msra.mxu0 0
    %301 = vmatpush.bf16.msra.mxu0 0
    %302 = vmatpush.bf16.msra.mxu0 0
    %303 = vmatpush.bf16.msra.mxu0 0
    %304 = vmatpush.bf16.msra.mxu0 0
    %305 = vmatpush.bf16.msra.mxu0 0
    %306 = vmatpush.bf16.msra.mxu0 %v193
    %307 = vmatmul.bf16.gmra.mxu0 %v174
    %v308 = vpop.f32.mrf.mxu0
    %v309 = vadd.f32 %v154, %v308
    %v310 = vpop.f32.mrf.mxu0
    %311 = vdwg.mxu0
    %v312 = vmax.f32 %v205, 0.0
    %v313 = vmax.f32 %v218, 0.0
    %v314 = vmax.f32 %v231, 0.0
    %v315 = vmax.f32 %v244, 0.0
    %v316 = vmax.f32 %v257, 0.0
    %v317 = vmax.f32 %v270, 0.0
    %v318 = vmax.f32 %v283, 0.0
    %v319 = vmax.f32 %v296, 0.0
    %v320 = vmax.f32 %v309, 0.0
    %v321 = vsel %vm137, 1, 0
    %v322 = vsel %vm138, 1, 0
    %v323 = vsel %vm139, 1, 0
    %v324 = vsel %vm140, 1, 0
    %v325 = vsel %vm141, 1, 0
    %v326 = vsel %vm142, 1, 0
    %v327 = vsel %vm143, 1, 0
    %v328 = vsel %vm144, 1, 0
    %v329 = vsel %vm145, 1, 0
    %vm330 = vcmp.eq.s32.totalorder %v321, 1
    %vm331 = vcmp.eq.s32.totalorder %v322, 1
    %vm332 = vcmp.eq.s32.totalorder %v323, 1
    %vm333 = vcmp.eq.s32.totalorder %v324, 1
    %vm334 = vcmp.eq.s32.totalorder %v325, 1
    %vm335 = vcmp.eq.s32.totalorder %v326, 1
    %vm336 = vcmp.eq.s32.totalorder %v327, 1
    %vm337 = vcmp.eq.s32.totalorder %v328, 1
    %vm338 = vcmp.eq.s32.totalorder %v329, 1
    %v339 = vsel %vm330, %v312, 0.0
    %v340 = vsel %vm331, %v313, 0.0
    %v341 = vsel %vm332, %v314, 0.0
    %v342 = vsel %vm333, %v315, 0.0
    %v343 = vsel %vm334, %v316, 0.0
    %v344 = vsel %vm335, %v317, 0.0
    %v345 = vsel %vm336, %v318, 0.0
    %v346 = vsel %vm337, %v319, 0.0
    %v347 = vsel %vm338, %v320, 0.0
    %348 = vrot.lane.b32.xlu0 %v339, 33
    %v349 = vpop.permute.xlu0 %348
    %350 = vrot.lane.b32.xlu0 %v340, 33
    %v351 = vpop.permute.xlu0 %350
    %352 = vrot.lane.b32.xlu0 %v341, 33
    %v353 = vpop.permute.xlu0 %352
    %354 = vrot.lane.b32.xlu0 %v342, 33
    %v355 = vpop.permute.xlu0 %354
    %356 = vrot.lane.b32.xlu0 %v343, 33
    %v357 = vpop.permute.xlu0 %356
    %358 = vrot.lane.b32.xlu0 %v344, 33
    %v359 = vpop.permute.xlu0 %358
    %360 = vrot.lane.b32.xlu0 %v345, 33
    %v361 = vpop.permute.xlu0 %360
    %362 = vrot.lane.b32.xlu0 %v346, 33
    %v363 = vpop.permute.xlu0 %362
    %364 = vrot.lane.b32.xlu0 %v347, 33
    %v365 = vpop.permute.xlu0 %364
    %vm366 = vcmp.lt.s32.totalorder %v29, 33
    %v367 = vsel %vm366, %v363, %v365
    %v368 = vsel %vm366, %v361, %v363
    %v369 = vsel %vm366, %v359, %v361
    %v370 = vsel %vm366, %v357, %v359
    %v371 = vsel %vm366, %v355, %v357
    %v372 = vsel %vm366, %v353, %v355
    %v373 = vsel %vm366, %v351, %v353
    %v374 = vsel %vm366, %v349, %v351
    %v375 = vsel %vm366, %v365, %v349
    %376 = vrot.lane.b32.xlu0 %v339, 32
    %v377 = vpop.permute.xlu0 %376
    %378 = vrot.lane.b32.xlu0 %v340, 32
    %v379 = vpop.permute.xlu0 %378
    %380 = vrot.lane.b32.xlu0 %v341, 32
    %v381 = vpop.permute.xlu0 %380
    %382 = vrot.lane.b32.xlu0 %v342, 32
    %v383 = vpop.permute.xlu0 %382
    %384 = vrot.lane.b32.xlu0 %v343, 32
    %v385 = vpop.permute.xlu0 %384
    %386 = vrot.lane.b32.xlu0 %v344, 32
    %v387 = vpop.permute.xlu0 %386
    %388 = vrot.lane.b32.xlu0 %v345, 32
    %v389 = vpop.permute.xlu0 %388
    %390 = vrot.lane.b32.xlu0 %v346, 32
    %v391 = vpop.permute.xlu0 %390
    %392 = vrot.lane.b32.xlu0 %v347, 32
    %v393 = vpop.permute.xlu0 %392
    %vm394 = vcmp.lt.s32.totalorder %v29, 32
    %v395 = vsel %vm394, %v391, %v393
    %v396 = vsel %vm394, %v389, %v391
    %v397 = vsel %vm394, %v387, %v389
    %v398 = vsel %vm394, %v385, %v387
    %v399 = vsel %vm394, %v383, %v385
    %v400 = vsel %vm394, %v381, %v383
    %v401 = vsel %vm394, %v379, %v381
    %v402 = vsel %vm394, %v377, %v379
    %v403 = vsel %vm394, %v393, %v377
    %404 = vrot.lane.b32.xlu0 %v339, 31
    %v405 = vpop.permute.xlu0 %404
    %406 = vrot.lane.b32.xlu0 %v340, 31
    %v407 = vpop.permute.xlu0 %406
    %408 = vrot.lane.b32.xlu0 %v341, 31
    %v409 = vpop.permute.xlu0 %408
    %410 = vrot.lane.b32.xlu0 %v342, 31
    %v411 = vpop.permute.xlu0 %410
    %412 = vrot.lane.b32.xlu0 %v343, 31
    %v413 = vpop.permute.xlu0 %412
    %414 = vrot.lane.b32.xlu0 %v344, 31
    %v415 = vpop.permute.xlu0 %414
    %416 = vrot.lane.b32.xlu0 %v345, 31
    %v417 = vpop.permute.xlu0 %416
    %418 = vrot.lane.b32.xlu0 %v346, 31
    %v419 = vpop.permute.xlu0 %418
    %420 = vrot.lane.b32.xlu0 %v347, 31
    %v421 = vpop.permute.xlu0 %420
    %vm422 = vcmp.lt.s32.totalorder %v29, 31
    %v423 = vsel %vm422, %v419, %v421
    %v424 = vsel %vm422, %v417, %v419
    %v425 = vsel %vm422, %v415, %v417
    %v426 = vsel %vm422, %v413, %v415
    %v427 = vsel %vm422, %v411, %v413
    %v428 = vsel %vm422, %v409, %v411
    %v429 = vsel %vm422, %v407, %v409
    %v430 = vsel %vm422, %v405, %v407
    %v431 = vsel %vm422, %v421, %v405
    %432 = vrot.lane.b32.xlu0 %v339, 1
    %v433 = vpop.permute.xlu0 %432
    %434 = vrot.lane.b32.xlu0 %v340, 1
    %v435 = vpop.permute.xlu0 %434
    %436 = vrot.lane.b32.xlu0 %v341, 1
    %v437 = vpop.permute.xlu0 %436
    %438 = vrot.lane.b32.xlu0 %v342, 1
    %v439 = vpop.permute.xlu0 %438
    %440 = vrot.lane.b32.xlu0 %v343, 1
    %v441 = vpop.permute.xlu0 %440
    %442 = vrot.lane.b32.xlu0 %v344, 1
    %v443 = vpop.permute.xlu0 %442
    %444 = vrot.lane.b32.xlu0 %v345, 1
    %v445 = vpop.permute.xlu0 %444
    %446 = vrot.lane.b32.xlu0 %v346, 1
    %v447 = vpop.permute.xlu0 %446
    %448 = vrot.lane.b32.xlu0 %v347, 1
    %v449 = vpop.permute.xlu0 %448
    %vm450 = vcmp.lt.s32.totalorder %v29, 1
    %v451 = vsel %vm450, %v447, %v449
    %v452 = vsel %vm450, %v445, %v447
    %v453 = vsel %vm450, %v443, %v445
    %v454 = vsel %vm450, %v441, %v443
    %v455 = vsel %vm450, %v439, %v441
    %v456 = vsel %vm450, %v437, %v439
    %v457 = vsel %vm450, %v435, %v437
    %v458 = vsel %vm450, %v433, %v435
    %v459 = vsel %vm450, %v449, %v433
    %460 = vrot.lane.b32.xlu0 %v339, 127
    %v461 = vpop.permute.xlu0 %460
    %462 = vrot.lane.b32.xlu0 %v340, 127
    %v463 = vpop.permute.xlu0 %462
    %464 = vrot.lane.b32.xlu0 %v341, 127
    %v465 = vpop.permute.xlu0 %464
    %466 = vrot.lane.b32.xlu0 %v342, 127
    %v467 = vpop.permute.xlu0 %466
    %468 = vrot.lane.b32.xlu0 %v343, 127
    %v469 = vpop.permute.xlu0 %468
    %470 = vrot.lane.b32.xlu0 %v344, 127
    %v471 = vpop.permute.xlu0 %470
    %472 = vrot.lane.b32.xlu0 %v345, 127
    %v473 = vpop.permute.xlu0 %472
    %474 = vrot.lane.b32.xlu0 %v346, 127
    %v475 = vpop.permute.xlu0 %474
    %476 = vrot.lane.b32.xlu0 %v347, 127
    %v477 = vpop.permute.xlu0 %476
    %vm478 = vcmp.lt.s32.totalorder %v29, 127
    %v479 = vsel %vm478, %v475, %v477
    %v480 = vsel %vm478, %v473, %v475
    %v481 = vsel %vm478, %v471, %v473
    %v482 = vsel %vm478, %v469, %v471
    %v483 = vsel %vm478, %v467, %v469
    %v484 = vsel %vm478, %v465, %v467
    %v485 = vsel %vm478, %v463, %v465
    %v486 = vsel %vm478, %v461, %v463
    %v487 = vsel %vm478, %v477, %v461
    %488 = vrot.lane.b32.xlu0 %v339, 97
    %v489 = vpop.permute.xlu0 %488
    %490 = vrot.lane.b32.xlu0 %v340, 97
    %v491 = vpop.permute.xlu0 %490
    %492 = vrot.lane.b32.xlu0 %v341, 97
    %v493 = vpop.permute.xlu0 %492
    %494 = vrot.lane.b32.xlu0 %v342, 97
    %v495 = vpop.permute.xlu0 %494
    %496 = vrot.lane.b32.xlu0 %v343, 97
    %v497 = vpop.permute.xlu0 %496
    %498 = vrot.lane.b32.xlu0 %v344, 97
    %v499 = vpop.permute.xlu0 %498
    %500 = vrot.lane.b32.xlu0 %v345, 97
    %v501 = vpop.permute.xlu0 %500
    %502 = vrot.lane.b32.xlu0 %v346, 97
    %v503 = vpop.permute.xlu0 %502
    %504 = vrot.lane.b32.xlu0 %v347, 97
    %v505 = vpop.permute.xlu0 %504
    %vm506 = vcmp.lt.s32.totalorder %v29, 97
    %v507 = vsel %vm506, %v503, %v505
    %v508 = vsel %vm506, %v501, %v503
    %v509 = vsel %vm506, %v499, %v501
    %v510 = vsel %vm506, %v497, %v499
    %v511 = vsel %vm506, %v495, %v497
    %v512 = vsel %vm506, %v493, %v495
    %v513 = vsel %vm506, %v491, %v493
    %v514 = vsel %vm506, %v489, %v491
    %v515 = vsel %vm506, %v505, %v489
    %516 = vrot.lane.b32.xlu0 %v339, 96
    %v517 = vpop.permute.xlu0 %516
    %518 = vrot.lane.b32.xlu0 %v340, 96
    %v519 = vpop.permute.xlu0 %518
    %520 = vrot.lane.b32.xlu0 %v341, 96
    %v521 = vpop.permute.xlu0 %520
    %522 = vrot.lane.b32.xlu0 %v342, 96
    %v523 = vpop.permute.xlu0 %522
    %524 = vrot.lane.b32.xlu0 %v343, 96
    %v525 = vpop.permute.xlu0 %524
    %526 = vrot.lane.b32.xlu0 %v344, 96
    %v527 = vpop.permute.xlu0 %526
    %528 = vrot.lane.b32.xlu0 %v345, 96
    %v529 = vpop.permute.xlu0 %528
    %530 = vrot.lane.b32.xlu0 %v346, 96
    %v531 = vpop.permute.xlu0 %530
    %532 = vrot.lane.b32.xlu0 %v347, 96
    %v533 = vpop.permute.xlu0 %532
    %vm534 = vcmp.lt.s32.totalorder %v29, 96
    %v535 = vsel %vm534, %v531, %v533
    %v536 = vsel %vm534, %v529, %v531
    %v537 = vsel %vm534, %v527, %v529
    %v538 = vsel %vm534, %v525, %v527
    %v539 = vsel %vm534, %v523, %v525
    %v540 = vsel %vm534, %v521, %v523
    %v541 = vsel %vm534, %v519, %v521
    %v542 = vsel %vm534, %v517, %v519
    %v543 = vsel %vm534, %v533, %v517
    %544 = vrot.lane.b32.xlu0 %v339, 95
    %v545 = vpop.permute.xlu0 %544
    %546 = vrot.lane.b32.xlu0 %v340, 95
    %v547 = vpop.permute.xlu0 %546
    %548 = vrot.lane.b32.xlu0 %v341, 95
    %v549 = vpop.permute.xlu0 %548
    %550 = vrot.lane.b32.xlu0 %v342, 95
    %v551 = vpop.permute.xlu0 %550
    %552 = vrot.lane.b32.xlu0 %v343, 95
    %v553 = vpop.permute.xlu0 %552
    %554 = vrot.lane.b32.xlu0 %v344, 95
    %v555 = vpop.permute.xlu0 %554
    %556 = vrot.lane.b32.xlu0 %v345, 95
    %v557 = vpop.permute.xlu0 %556
    %558 = vrot.lane.b32.xlu0 %v346, 95
    %v559 = vpop.permute.xlu0 %558
    %560 = vrot.lane.b32.xlu0 %v347, 95
    %v561 = vpop.permute.xlu0 %560
    %vm562 = vcmp.lt.s32.totalorder %v29, 95
    %v563 = vsel %vm562, %v559, %v561
    %v564 = vsel %vm562, %v557, %v559
    %v565 = vsel %vm562, %v555, %v557
    %v566 = vsel %vm562, %v553, %v555
    %v567 = vsel %vm562, %v551, %v553
    %v568 = vsel %vm562, %v549, %v551
    %v569 = vsel %vm562, %v547, %v549
    %v570 = vsel %vm562, %v545, %v547
    %v571 = vsel %vm562, %v561, %v545
    %v572 = vpack.c.bf16 %v403, %v375
    %v573 = vpack.c.bf16 %v402, %v374
    %v574 = vpack.c.bf16 %v401, %v373
    %v575 = vpack.c.bf16 %v400, %v372
    %v576 = vpack.c.bf16 %v399, %v371
    %v577 = vpack.c.bf16 %v398, %v370
    %v578 = vpack.c.bf16 %v397, %v369
    %v579 = vpack.c.bf16 %v396, %v368
    %v580 = vpack.c.bf16 %v395, %v367
    %v581 = vpack.c.bf16 %v459, %v431
    %v582 = vpack.c.bf16 %v458, %v430
    %v583 = vpack.c.bf16 %v457, %v429
    %v584 = vpack.c.bf16 %v456, %v428
    %v585 = vpack.c.bf16 %v455, %v427
    %v586 = vpack.c.bf16 %v454, %v426
    %v587 = vpack.c.bf16 %v453, %v425
    %v588 = vpack.c.bf16 %v452, %v424
    %v589 = vpack.c.bf16 %v451, %v423
    %v590 = vpack.c.bf16 %v486, %v339
    %v591 = vpack.c.bf16 %v485, %v340
    %v592 = vpack.c.bf16 %v484, %v341
    %v593 = vpack.c.bf16 %v483, %v342
    %v594 = vpack.c.bf16 %v482, %v343
    %v595 = vpack.c.bf16 %v481, %v344
    %v596 = vpack.c.bf16 %v480, %v345
    %v597 = vpack.c.bf16 %v479, %v346
    %v598 = vpack.c.bf16 %v487, %v347
    %v599 = vpack.c.bf16 %v542, %v514
    %v600 = vpack.c.bf16 %v541, %v513
    %v601 = vpack.c.bf16 %v540, %v512
    %v602 = vpack.c.bf16 %v539, %v511
    %v603 = vpack.c.bf16 %v538, %v510
    %v604 = vpack.c.bf16 %v537, %v509
    %v605 = vpack.c.bf16 %v536, %v508
    %v606 = vpack.c.bf16 %v535, %v507
    %v607 = vpack.c.bf16 %v543, %v515
    %v608 = vpack.c.bf16 %v570, %v570
    %v609 = vpack.c.bf16 %v569, %v569
    %v610 = vpack.c.bf16 %v568, %v568
    %v611 = vpack.c.bf16 %v567, %v567
    %v612 = vpack.c.bf16 %v566, %v566
    %v613 = vpack.c.bf16 %v565, %v565
    %v614 = vpack.c.bf16 %v564, %v564
    %v615 = vpack.c.bf16 %v563, %v563
    %v616 = vpack.c.bf16 %v571, %v571
    %v617 = vld [vmem:[%s3] sm:$0xf]
    %v618 = vld [vmem:[%s4] sm:$0xff]
    %620 = vset.pattern.permute.xlu0 0
    %621 = vperm.xlu0 %620, %v618
    %v622 = vpop.permute.xlu0 %621
    %vm624 = vcmask 588800
    %v626 = vsel %vm624, %v617, 0
    %vm628 = vcmask 1043456
    %v630 = vsel %vm628, %v608, 0
    %v633 = vsel %vm628, %v609, 0
    %v636 = vsel %vm628, %v610, 0
    %v639 = vsel %vm628, %v611, 0
    %v642 = vsel %vm628, %v612, 0
    %v645 = vsel %vm628, %v613, 0
    %v648 = vsel %vm628, %v614, 0
    %v651 = vsel %vm628, %v615, 0
    %v654 = vsel %vm628, %v616, 0
    %656 = vmatpush.bf16.msra.mxu0 0
    %657 = vmatpush.bf16.msra.mxu0 0
    %658 = vmatpush.bf16.msra.mxu0 0
    %659 = vmatpush.bf16.msra.mxu0 %v630
    %660 = vmatpush.bf16.msra.mxu0 %v599
    %661 = vmatpush.bf16.msra.mxu0 %v590
    %662 = vmatpush.bf16.msra.mxu0 %v581
    %663 = vmatpush.bf16.msra.mxu0 %v572
    %664 = vmatmul.bf16.gmra.mxu0 %v626
    %v665 = vpop.f32.mrf.mxu0
    %v666 = vadd.f32 %v622, %v665
    %v667 = vpop.f32.mrf.mxu0
    %668 = vdwg.mxu0
    %669 = vmatpush.bf16.msra.mxu0 0
    %670 = vmatpush.bf16.msra.mxu0 0
    %671 = vmatpush.bf16.msra.mxu0 0
    %672 = vmatpush.bf16.msra.mxu0 %v633
    %673 = vmatpush.bf16.msra.mxu0 %v600
    %674 = vmatpush.bf16.msra.mxu0 %v591
    %675 = vmatpush.bf16.msra.mxu0 %v582
    %676 = vmatpush.bf16.msra.mxu0 %v573
    %677 = vmatmul.bf16.gmra.mxu0 %v626
    %v678 = vpop.f32.mrf.mxu0
    %v679 = vadd.f32 %v622, %v678
    %v680 = vpop.f32.mrf.mxu0
    %681 = vdwg.mxu0
    %682 = vmatpush.bf16.msra.mxu0 0
    %683 = vmatpush.bf16.msra.mxu0 0
    %684 = vmatpush.bf16.msra.mxu0 0
    %685 = vmatpush.bf16.msra.mxu0 %v636
    %686 = vmatpush.bf16.msra.mxu0 %v601
    %687 = vmatpush.bf16.msra.mxu0 %v592
    %688 = vmatpush.bf16.msra.mxu0 %v583
    %689 = vmatpush.bf16.msra.mxu0 %v574
    %690 = vmatmul.bf16.gmra.mxu0 %v626
    %v691 = vpop.f32.mrf.mxu0
    %v692 = vadd.f32 %v622, %v691
    %v693 = vpop.f32.mrf.mxu0
    %694 = vdwg.mxu0
    %695 = vmatpush.bf16.msra.mxu0 0
    %696 = vmatpush.bf16.msra.mxu0 0
    %697 = vmatpush.bf16.msra.mxu0 0
    %698 = vmatpush.bf16.msra.mxu0 %v639
    %699 = vmatpush.bf16.msra.mxu0 %v602
    %700 = vmatpush.bf16.msra.mxu0 %v593
    %701 = vmatpush.bf16.msra.mxu0 %v584
    %702 = vmatpush.bf16.msra.mxu0 %v575
    %703 = vmatmul.bf16.gmra.mxu0 %v626
    %v704 = vpop.f32.mrf.mxu0
    %v705 = vadd.f32 %v622, %v704
    %v706 = vpop.f32.mrf.mxu0
    %707 = vdwg.mxu0
    %708 = vmatpush.bf16.msra.mxu0 0
    %709 = vmatpush.bf16.msra.mxu0 0
    %710 = vmatpush.bf16.msra.mxu0 0
    %711 = vmatpush.bf16.msra.mxu0 %v642
    %712 = vmatpush.bf16.msra.mxu0 %v603
    %713 = vmatpush.bf16.msra.mxu0 %v594
    %714 = vmatpush.bf16.msra.mxu0 %v585
    %715 = vmatpush.bf16.msra.mxu0 %v576
    %716 = vmatmul.bf16.gmra.mxu0 %v626
    %v717 = vpop.f32.mrf.mxu0
    %v718 = vadd.f32 %v622, %v717
    %v719 = vpop.f32.mrf.mxu0
    %720 = vdwg.mxu0
    %721 = vmatpush.bf16.msra.mxu0 0
    %722 = vmatpush.bf16.msra.mxu0 0
    %723 = vmatpush.bf16.msra.mxu0 0
    %724 = vmatpush.bf16.msra.mxu0 %v645
    %725 = vmatpush.bf16.msra.mxu0 %v604
    %726 = vmatpush.bf16.msra.mxu0 %v595
    %727 = vmatpush.bf16.msra.mxu0 %v586
    %728 = vmatpush.bf16.msra.mxu0 %v577
    %729 = vmatmul.bf16.gmra.mxu0 %v626
    %v730 = vpop.f32.mrf.mxu0
    %v731 = vadd.f32 %v622, %v730
    %v732 = vpop.f32.mrf.mxu0
    %733 = vdwg.mxu0
    %734 = vmatpush.bf16.msra.mxu0 0
    %735 = vmatpush.bf16.msra.mxu0 0
    %736 = vmatpush.bf16.msra.mxu0 0
    %737 = vmatpush.bf16.msra.mxu0 %v648
    %738 = vmatpush.bf16.msra.mxu0 %v605
    %739 = vmatpush.bf16.msra.mxu0 %v596
    %740 = vmatpush.bf16.msra.mxu0 %v587
    %741 = vmatpush.bf16.msra.mxu0 %v578
    %742 = vmatmul.bf16.gmra.mxu0 %v626
    %v743 = vpop.f32.mrf.mxu0
    %v744 = vadd.f32 %v622, %v743
    %v745 = vpop.f32.mrf.mxu0
    %746 = vdwg.mxu0
    %747 = vmatpush.bf16.msra.mxu0 0
    %748 = vmatpush.bf16.msra.mxu0 0
    %749 = vmatpush.bf16.msra.mxu0 0
    %750 = vmatpush.bf16.msra.mxu0 %v651
    %751 = vmatpush.bf16.msra.mxu0 %v606
    %752 = vmatpush.bf16.msra.mxu0 %v597
    %753 = vmatpush.bf16.msra.mxu0 %v588
    %754 = vmatpush.bf16.msra.mxu0 %v579
    %755 = vmatmul.bf16.gmra.mxu0 %v626
    %v756 = vpop.f32.mrf.mxu0
    %v757 = vadd.f32 %v622, %v756
    %v758 = vpop.f32.mrf.mxu0
    %759 = vdwg.mxu0
    %760 = vmatpush.bf16.msra.mxu0 0
    %761 = vmatpush.bf16.msra.mxu0 0
    %762 = vmatpush.bf16.msra.mxu0 0
    %763 = vmatpush.bf16.msra.mxu0 %v654
    %764 = vmatpush.bf16.msra.mxu0 %v607
    %765 = vmatpush.bf16.msra.mxu0 %v598
    %766 = vmatpush.bf16.msra.mxu0 %v589
    %767 = vmatpush.bf16.msra.mxu0 %v580
    %768 = vmatmul.bf16.gmra.mxu0 %v626
    %v769 = vpop.f32.mrf.mxu0
    %v770 = vadd.f32 %v622, %v769
    %v771 = vpop.f32.mrf.mxu0
    %772 = vdwg.mxu0
    %v773 = vmax.f32 %v666, 0.0
    %v774 = vmax.f32 %v679, 0.0
    %v775 = vmax.f32 %v692, 0.0
    %v776 = vmax.f32 %v705, 0.0
    %v777 = vmax.f32 %v718, 0.0
    %v778 = vmax.f32 %v731, 0.0
    %v779 = vmax.f32 %v744, 0.0
    %v780 = vmax.f32 %v757, 0.0
    %v781 = vmax.f32 %v770, 0.0
    %v782 = vpack.c.bf16 %v773, %v773
    %v783 = vpack.c.bf16 %v774, %v774
    %v784 = vpack.c.bf16 %v775, %v775
    %v785 = vpack.c.bf16 %v776, %v776
    %v786 = vpack.c.bf16 %v777, %v777
    %v787 = vpack.c.bf16 %v778, %v778
    %v788 = vpack.c.bf16 %v779, %v779
    %v789 = vpack.c.bf16 %v780, %v780
    %v790 = vpack.c.bf16 %v781, %v781
    %v791 = vld [vmem:[%s5] sm:$0x3]
    %v792 = vld [vmem:[%s6] sm:$0xf]
    %794 = vset.pattern.permute.xlu0 0
    %795 = vperm.xlu0 %794, %v792
    %v796 = vpop.permute.xlu0 %795
    %vm798 = vcmask 64512
    %v800 = vsel %vm798, %v791, 0
    %v803 = vsel %vm628, %v782, 0
    %v806 = vsel %vm628, %v783, 0
    %v809 = vsel %vm628, %v784, 0
    %v812 = vsel %vm628, %v785, 0
    %v815 = vsel %vm628, %v786, 0
    %v818 = vsel %vm628, %v787, 0
    %v821 = vsel %vm628, %v788, 0
    %v824 = vsel %vm628, %v789, 0
    %v827 = vsel %vm628, %v790, 0
    %829 = vmatpush.bf16.msra.mxu0 0
    %830 = vmatpush.bf16.msra.mxu0 0
    %831 = vmatpush.bf16.msra.mxu0 0
    %832 = vmatpush.bf16.msra.mxu0 0
    %833 = vmatpush.bf16.msra.mxu0 0
    %834 = vmatpush.bf16.msra.mxu0 0
    %835 = vmatpush.bf16.msra.mxu0 0
    %836 = vmatpush.bf16.msra.mxu0 %v803
    %837 = vmatmul.bf16.gmra.mxu0 %v800
    %v838 = vpop.f32.mrf.mxu0
    %v839 = vadd.f32 %v796, %v838
    %v840 = vpop.f32.mrf.mxu0
    %841 = vdwg.mxu0
    %842 = vmatpush.bf16.msra.mxu0 0
    %843 = vmatpush.bf16.msra.mxu0 0
    %844 = vmatpush.bf16.msra.mxu0 0
    %845 = vmatpush.bf16.msra.mxu0 0
    %846 = vmatpush.bf16.msra.mxu0 0
    %847 = vmatpush.bf16.msra.mxu0 0
    %848 = vmatpush.bf16.msra.mxu0 0
    %849 = vmatpush.bf16.msra.mxu0 %v806
    %850 = vmatmul.bf16.gmra.mxu0 %v800
    %v851 = vpop.f32.mrf.mxu0
    %v852 = vadd.f32 %v796, %v851
    %v853 = vpop.f32.mrf.mxu0
    %854 = vdwg.mxu0
    %855 = vmatpush.bf16.msra.mxu0 0
    %856 = vmatpush.bf16.msra.mxu0 0
    %857 = vmatpush.bf16.msra.mxu0 0
    %858 = vmatpush.bf16.msra.mxu0 0
    %859 = vmatpush.bf16.msra.mxu0 0
    %860 = vmatpush.bf16.msra.mxu0 0
    %861 = vmatpush.bf16.msra.mxu0 0
    %862 = vmatpush.bf16.msra.mxu0 %v809
    %863 = vmatmul.bf16.gmra.mxu0 %v800
    %v864 = vpop.f32.mrf.mxu0
    %v865 = vadd.f32 %v796, %v864
    %v866 = vpop.f32.mrf.mxu0
    %867 = vdwg.mxu0
    %868 = vmatpush.bf16.msra.mxu0 0
    %869 = vmatpush.bf16.msra.mxu0 0
    %870 = vmatpush.bf16.msra.mxu0 0
    %871 = vmatpush.bf16.msra.mxu0 0
    %872 = vmatpush.bf16.msra.mxu0 0
    %873 = vmatpush.bf16.msra.mxu0 0
    %874 = vmatpush.bf16.msra.mxu0 0
    %875 = vmatpush.bf16.msra.mxu0 %v812
    %876 = vmatmul.bf16.gmra.mxu0 %v800
    %v877 = vpop.f32.mrf.mxu0
    %v878 = vadd.f32 %v796, %v877
    %v879 = vpop.f32.mrf.mxu0
    %880 = vdwg.mxu0
    %881 = vmatpush.bf16.msra.mxu0 0
    %882 = vmatpush.bf16.msra.mxu0 0
    %883 = vmatpush.bf16.msra.mxu0 0
    %884 = vmatpush.bf16.msra.mxu0 0
    %885 = vmatpush.bf16.msra.mxu0 0
    %886 = vmatpush.bf16.msra.mxu0 0
    %887 = vmatpush.bf16.msra.mxu0 0
    %888 = vmatpush.bf16.msra.mxu0 %v815
    %889 = vmatmul.bf16.gmra.mxu0 %v800
    %v890 = vpop.f32.mrf.mxu0
    %v891 = vadd.f32 %v796, %v890
    %v892 = vpop.f32.mrf.mxu0
    %893 = vdwg.mxu0
    %894 = vmatpush.bf16.msra.mxu0 0
    %895 = vmatpush.bf16.msra.mxu0 0
    %896 = vmatpush.bf16.msra.mxu0 0
    %897 = vmatpush.bf16.msra.mxu0 0
    %898 = vmatpush.bf16.msra.mxu0 0
    %899 = vmatpush.bf16.msra.mxu0 0
    %900 = vmatpush.bf16.msra.mxu0 0
    %901 = vmatpush.bf16.msra.mxu0 %v818
    %902 = vmatmul.bf16.gmra.mxu0 %v800
    %v903 = vpop.f32.mrf.mxu0
    %v904 = vadd.f32 %v796, %v903
    %v905 = vpop.f32.mrf.mxu0
    %906 = vdwg.mxu0
    %907 = vmatpush.bf16.msra.mxu0 0
    %908 = vmatpush.bf16.msra.mxu0 0
    %909 = vmatpush.bf16.msra.mxu0 0
    %910 = vmatpush.bf16.msra.mxu0 0
    %911 = vmatpush.bf16.msra.mxu0 0
    %912 = vmatpush.bf16.msra.mxu0 0
    %913 = vmatpush.bf16.msra.mxu0 0
    %914 = vmatpush.bf16.msra.mxu0 %v821
    %915 = vmatmul.bf16.gmra.mxu0 %v800
    %v916 = vpop.f32.mrf.mxu0
    %v917 = vadd.f32 %v796, %v916
    %v918 = vpop.f32.mrf.mxu0
    %919 = vdwg.mxu0
    %920 = vmatpush.bf16.msra.mxu0 0
    %921 = vmatpush.bf16.msra.mxu0 0
    %922 = vmatpush.bf16.msra.mxu0 0
    %923 = vmatpush.bf16.msra.mxu0 0
    %924 = vmatpush.bf16.msra.mxu0 0
    %925 = vmatpush.bf16.msra.mxu0 0
    %926 = vmatpush.bf16.msra.mxu0 0
    %927 = vmatpush.bf16.msra.mxu0 %v824
    %928 = vmatmul.bf16.gmra.mxu0 %v800
    %v929 = vpop.f32.mrf.mxu0
    %v930 = vadd.f32 %v796, %v929
    %v931 = vpop.f32.mrf.mxu0
    %932 = vdwg.mxu0
    %933 = vmatpush.bf16.msra.mxu0 0
    %934 = vmatpush.bf16.msra.mxu0 0
    %935 = vmatpush.bf16.msra.mxu0 0
    %936 = vmatpush.bf16.msra.mxu0 0
    %937 = vmatpush.bf16.msra.mxu0 0
    %938 = vmatpush.bf16.msra.mxu0 0
    %939 = vmatpush.bf16.msra.mxu0 0
    %940 = vmatpush.bf16.msra.mxu0 %v827
    %941 = vmatmul.bf16.gmra.mxu0 %v800
    %v942 = vpop.f32.mrf.mxu0
    %v943 = vadd.f32 %v796, %v942
    %v944 = vpop.f32.mrf.mxu0
    %945 = vdwg.mxu0
    %v954 = vrot.slane %v852, 4
    %v955 = vrot.slane %v878, 4
    %v956 = vrot.slane %v904, 4
    %v957 = vrot.slane %v930, 4
    %v958 = vsel %vm628, %v839, %v954
    %v959 = vsel %vm628, %v865, %v955
    %v960 = vsel %vm628, %v891, %v956
    %v961 = vsel %vm628, %v917, %v957
    %966 = vst [vmem:[#allocation2] sm:$0xff] %v958
    %967 = vst [vmem:[#allocation2 + $0x8] sm:$0xff] %v959
    %968 = vst [vmem:[#allocation2 + $0x10] sm:$0xff] %v960
    %969 = vst [vmem:[#allocation2 + $0x18] sm:$0xff] %v961
    %970 = vst [vmem:[#allocation2 + $0x20] sm:$0xf] %v943
    // Predicated region
    $region30: #{tpu_custom_call.1} parent=1 // pred_check
      _
    $region31: #{tpu_custom_call.1} parent=1 // pred_check_branch
      %972 = sbr.rel (0) target = $region33
    $region32: #{tpu_custom_call.1} parent=1 // pred_region
      %974 = vsyncadd [#allocation3], 0
      %s976 = sshll.u32 [#allocation2], 4
      %s977 = int_to_ptr.vmem [resolvable:$true] %s976
      %s978 = sshll.u32 %s7, 4
      %s979 = int_to_ptr.hbm [resolvable:$true] %s978
      %981 = dma.vmem_to_hbm [thread:$0]  %s977, 576, %s979, [#allocation3]
    $region33: #{tpu_custom_call.1} parent=1 // pred_fallthru
      _
    // Predicated region
    $region34: #{tpu_custom_call.1} parent=1 // pred_check
      _
    $region35: #{tpu_custom_call.1} parent=1 // pred_check_branch
      %983 = sbr.rel (0) target = $region37
    $region36: #{tpu_custom_call.1} parent=1 // pred_region
      %985 = dma.done [#allocation3], 576
    $region37: #{tpu_custom_call.1} parent=1 // pred_fallthru
      _
    %986 = vsyncpa [#allocation3], 1

</llo_original>
